<compile_context>
chip_gen: v6e
topology: v6e:2x2x1
jax: 0.10.0
libtpu: 0.0.40
codegen_flags: <defaults>
</compile_context>

<pallas_src>
import jax
import jax.numpy as jnp
from jax.experimental import pallas as pl
from jax.experimental.pallas import tpu as pltpu

_NEG = -1e30  # mask value for padded class lanes (exp -> 0 in the softmax)


def _round_up(n, m):
    return ((n + m - 1) // m) * m


def _ped_softmax_kernel(x_ref, w_ref, b_ref, wc_ref, bc_ref, out_ref):
    # Fused hidden layer: ONE MXU matmul over the padded [x | f | v] slab.
    h = jnp.dot(x_ref[...], w_ref[...], preferred_element_type=jnp.float32)
    h = jnp.maximum(h + b_ref[...], 0.0)                       # bias + relu (f32, VPU)

    # Classifier head on a full 128-wide hidden tile -> lane-dense logits.
    logits = jnp.dot(h.astype(wc_ref.dtype), wc_ref[...],
                     preferred_element_type=jnp.float32) + bc_ref[...]

    # Numerically stable softmax over the class axis (padded lanes sit at -1e30,
    # so they contribute exactly 0 to the denominator). Exact normalization:
    # the kernel is HBM-streaming-bound, so the divide is wall-clock free.
    m = jnp.max(logits, axis=1, keepdims=True)
    e = jnp.exp(logits - m)
    p = e / jnp.sum(e, axis=1, keepdims=True)

    # Store only the narrow real-class window (cuts output HBM writeback ~16x).
    out_ref[...] = p[:, : out_ref.shape[1]]


def _choose_batch_tiling(B, block_b):
    """Pick (TB, Bp, n_tiles): even split of the batch, rounded to 16 rows,
    capped at block_b, with >=2 tiles for larger batches (v7x megacore)."""
    n_tiles = max(-(-B // block_b), 2 if B >= 64 else 1)
    TB = _round_up(-(-B // n_tiles), 16)
    Bp = _round_up(B, TB)
    return TB, Bp, Bp // TB


def muster_model_forward(x_nchw, f, v, params, *, block_b=2048):
    """x_nchw: (B, C, H, W) f32; f: (B, Df); v: (B, Dv). Returns (B, n_clss) probs."""
    B = x_nchw.shape[0]
    x2d = x_nchw.reshape(B, -1)                                # NCHW -> (B, C*H*W)
    w1, w2, w3, b, wc, bc = (params[k] for k in ("w1", "w2", "w3", "b", "wc", "bc"))
    dx, hidden = w1.shape
    df, dv = w2.shape[0], w3.shape[0]
    n_clss = wc.shape[1]

    # ---- fused / padded operand layout (done once, wrapper side, all bf16) ----
    K = dx + df + dv
    Kp = _round_up(K, 128)                  # lane-aligned contraction axis
    Hp = 128                                # padded hidden = full MXU output width
    Cp = 128                                # lane-dense internal logits width
    Cout = _round_up(n_clss, 8)             # narrow output writeback width
    TB, Bp, n_tiles = _choose_batch_tiling(B, block_b)

    # [x2d | f | v | 0-pad] -> one (B, Kp) bf16 slab (cast BEFORE concat so the
    # slab is never materialized in f32), then row-pad to Bp.
    parts = [x2d.astype(jnp.bfloat16), f.astype(jnp.bfloat16), v.astype(jnp.bfloat16)]
    if Kp > K:
        parts.append(jnp.zeros((B, Kp - K), jnp.bfloat16))
    xfv = jnp.concatenate(parts, axis=1)
    if Bp > B:
        xfv = jnp.pad(xfv, ((0, Bp - B), (0, 0)))

    # W = [w1; w2; w3], zero-padded to (Kp, Hp); padded hidden columns are zero.
    w_fused = jnp.concatenate([w1, w2, w3], axis=0)
    w_fused = jnp.pad(w_fused, ((0, Kp - K), (0, Hp - hidden))).astype(jnp.bfloat16)
    b_p = jnp.pad(b.astype(jnp.float32), ((0, 0), (0, Hp - hidden)))

    # Classifier: padded hidden rows / class cols are zero; padded class biases
    # are -1e30 (kept in f32!) so they never leak into the softmax denominator.
    wc_p = jnp.pad(wc, ((0, Hp - hidden), (0, Cp - n_clss))).astype(jnp.bfloat16)
    bc_p = jnp.pad(bc.astype(jnp.float32), ((0, 0), (0, Cp - n_clss)),
                   constant_values=_NEG)

    grid = (n_tiles,)
    cost = pl.CostEstimate(
        flops=2 * Bp * Kp * Hp + 2 * Bp * Hp * Cp,
        transcendentals=Bp * Cp,
        bytes_accessed=(xfv.size + w_fused.size + wc_p.size) * 2
        + (b_p.size + bc_p.size) * 4
        + Bp * Cout * 4,
    )

    out = pl.pallas_call(
        _ped_softmax_kernel,
        out_shape=jax.ShapeDtypeStruct((Bp, Cout), jnp.float32),
        grid=grid,
        in_specs=[
            pl.BlockSpec((TB, Kp), lambda i: (i, 0)),   # activations: batch-tiled
            pl.BlockSpec((Kp, Hp), lambda i: (0, 0)),   # fused input weight (resident)
            pl.BlockSpec((1, Hp), lambda i: (0, 0)),    # hidden bias
            pl.BlockSpec((Hp, Cp), lambda i: (0, 0)),   # classifier weight
            pl.BlockSpec((1, Cp), lambda i: (0, 0)),    # classifier bias (+ lane mask)
        ],
        out_specs=pl.BlockSpec((TB, Cout), lambda i: (i, 0)),
        compiler_params=pltpu.CompilerParams(
            dimension_semantics=("parallel",),
            vmem_limit_bytes=48 * 1024 * 1024,
        ),
        cost_estimate=cost,
    )(xfv, w_fused, b_p, wc_p, bc_p)

    return out[:B, :n_clss]


def init_params(key, dx, df, dv, hidden=32, n_clss=3):
    k1, k2, k3, k4 = jax.random.split(key, 4)
    scale = lambda d: 1.0 / jnp.sqrt(jnp.float32(d))
    return {
        "w1": jax.random.normal(k1, (dx, hidden), jnp.float32) * scale(dx),
        "w2": jax.random.normal(k2, (df, hidden), jnp.float32) * scale(df),
        "w3": jax.random.normal(k3, (dv, hidden), jnp.float32) * scale(dv),
        "b":  jnp.zeros((1, hidden), jnp.float32),
        "wc": jax.random.normal(k4, (hidden, n_clss), jnp.float32) * scale(hidden),
        "bc": jnp.zeros((1, n_clss), jnp.float32),
    }


def reference_forward(x_nchw, f, v, params):
    """Pure-JAX f32 reference of the same synthetic PedModel + softmax."""
    B = x_nchw.shape[0]
    x2d = x_nchw.reshape(B, -1)
    h = x2d @ params["w1"] + f @ params["w2"] + v @ params["w3"] + params["b"]
    h = jnp.maximum(h, 0.0)
    logits = h @ params["wc"] + params["bc"]
    return jax.nn.softmax(logits, axis=1)


if __name__ == "__main__":
    key = jax.random.PRNGKey(0)
    kx, kf, kv, kp = jax.random.split(key, 4)

    B, C, H, W = 2, 4, 16, 16
    Df, Dv = 8, 2

    x = jax.random.normal(kx, (B, C, H, W), jnp.float32)   # pose/image-like input (NCHW)
    f = jax.random.normal(kf, (B, Df), jnp.float32)         # frame/context features
    v = jax.random.normal(kv, (B, Dv), jnp.float32)         # velocity features

    params = init_params(kp, dx=C * H * W, df=Df, dv=Dv, hidden=32, n_clss=3)

    probs = muster_model_forward(x, f, v, params)
    probs = jax.block_until_ready(probs)

    # sanity: shape, finite, rows sum to ~1 (exact softmax), close to f32 ref
    ref = reference_forward(x, f, v, params)
    assert probs.shape == (B, 3)
    assert bool(jnp.all(jnp.isfinite(probs)))
    assert bool(jnp.all(jnp.abs(jnp.sum(probs, axis=1) - 1.0) < 1e-3))
    assert bool(jnp.max(jnp.abs(probs - ref)) < 5e-2)  # bf16 MXU operands vs f32 ref
    print("KERNEL_OK")
</pallas_src>

<mosaic_0001>
module attributes {stable_mosaic.version = 11 : i64} {
  func.func @_ped_softmax_kernel(%arg0: i32, %arg1: memref<16x1152xbf16, #tpu.memory_space<vmem>>, %arg2: memref<1152x128xbf16, #tpu.memory_space<vmem>>, %arg3: memref<1x128xf32, #tpu.memory_space<vmem>>, %arg4: memref<128x128xbf16, #tpu.memory_space<vmem>>, %arg5: memref<1x128xf32, #tpu.memory_space<vmem>>, %arg6: memref<16x8xf32, #tpu.memory_space<vmem>>) attributes {dimension_semantics = [#tpu.dimension_semantics<parallel>], iteration_bounds = array<i64: 1>, scalar_prefetch = 0 : i64, scratch_operands = 0 : i64, tpu.core_type = #tpu.core_type<tc>, window_params = [{transform_indices = @transform_0, window_bounds = array<i64: 16, 1152>}, {pipeline_mode = #tpu.pipeline_mode<synchronous>, transform_indices = @transform_1, window_bounds = array<i64: 1152, 128>}, {pipeline_mode = #tpu.pipeline_mode<synchronous>, transform_indices = @transform_2, window_bounds = array<i64: 1, 128>}, {pipeline_mode = #tpu.pipeline_mode<synchronous>, transform_indices = @transform_3, window_bounds = array<i64: 128, 128>}, {pipeline_mode = #tpu.pipeline_mode<synchronous>, transform_indices = @transform_4, window_bounds = array<i64: 1, 128>}, {transform_indices = @transform_5, window_bounds = array<i64: 16, 8>}]} {
    %c0 = arith.constant 0 : index
    %c0_0 = arith.constant 0 : index
    %0 = vector.load %arg1[%c0, %c0_0] : memref<16x1152xbf16, #tpu.memory_space<vmem>>, vector<16x1152xbf16>
    %c0_1 = arith.constant 0 : index
    %c0_2 = arith.constant 0 : index
    %1 = vector.load %arg2[%c0_1, %c0_2] : memref<1152x128xbf16, #tpu.memory_space<vmem>>, vector<1152x128xbf16>
    %cst = arith.constant dense<0.000000e+00> : vector<16x128xf32>
    %2 = tpu.matmul %0, %1, %cst {dimension_numbers = #tpu.dot_dimension_numbers<[1], [0], [0], [1], [0, 0, 1, 1], [], []>} : vector<16x1152xbf16>, vector<1152x128xbf16>, vector<16x128xf32> -> vector<16x128xf32>
    %c0_3 = arith.constant 0 : index
    %c0_4 = arith.constant 0 : index
    %3 = vector.load %arg3[%c0_3, %c0_4] : memref<1x128xf32, #tpu.memory_space<vmem>>, vector<1x128xf32>
    %4 = vector.broadcast %3 : vector<1x128xf32> to vector<16x128xf32>
    %5 = arith.addf %2, %4 : vector<16x128xf32>
    %cst_5 = arith.constant 0.000000e+00 : f32
    %6 = vector.broadcast %cst_5 : f32 to vector<16x128xf32>
    %7 = arith.maximumf %5, %6 : vector<16x128xf32>
    %8 = arith.truncf %7 : vector<16x128xf32> to vector<16x128xbf16>
    %c0_6 = arith.constant 0 : index
    %c0_7 = arith.constant 0 : index
    %9 = vector.load %arg4[%c0_6, %c0_7] : memref<128x128xbf16, #tpu.memory_space<vmem>>, vector<128x128xbf16>
    %cst_8 = arith.constant dense<0.000000e+00> : vector<16x128xf32>
    %10 = tpu.matmul %8, %9, %cst_8 {dimension_numbers = #tpu.dot_dimension_numbers<[1], [0], [0], [1], [0, 0, 1, 1], [], []>} : vector<16x128xbf16>, vector<128x128xbf16>, vector<16x128xf32> -> vector<16x128xf32>
    %c0_9 = arith.constant 0 : index
    %c0_10 = arith.constant 0 : index
    %11 = vector.load %arg5[%c0_9, %c0_10] : memref<1x128xf32, #tpu.memory_space<vmem>>, vector<1x128xf32>
    %12 = vector.broadcast %11 : vector<1x128xf32> to vector<16x128xf32>
    %13 = arith.addf %10, %12 : vector<16x128xf32>
    %cst_11 = arith.constant dense<0xFF800000> : vector<16xf32>
    %14 = vector.multi_reduction <maximumf>, %13, %cst_11 [1] : vector<16x128xf32> to vector<16xf32>
    %15 = vector.shape_cast %14 : vector<16xf32> to vector<16x1xf32>
    %16 = vector.broadcast %15 : vector<16x1xf32> to vector<16x128xf32>
    %17 = arith.subf %13, %16 : vector<16x128xf32>
    %18 = math.exp %17 : vector<16x128xf32>
    %cst_12 = arith.constant dense<0.000000e+00> : vector<16xf32>
    %19 = vector.multi_reduction <add>, %18, %cst_12 [1] : vector<16x128xf32> to vector<16xf32>
    %20 = vector.shape_cast %19 : vector<16xf32> to vector<16x1xf32>
    %21 = vector.broadcast %20 : vector<16x1xf32> to vector<16x128xf32>
    %22 = arith.divf %18, %21 : vector<16x128xf32>
    %23 = vector.extract_strided_slice %22 {offsets = [0, 0], sizes = [16, 8], strides = [1, 1]} : vector<16x128xf32> to vector<16x8xf32>
    %c0_13 = arith.constant 0 : index
    %c0_14 = arith.constant 0 : index
    %24 = vector.load %arg6[%c0_13, %c0_14] : memref<16x8xf32, #tpu.memory_space<vmem>>, vector<16x8xf32>
    tpu.vector_store %arg6[%c0_13, %c0_14], %23 {strides = array<i32>} : memref<16x8xf32, #tpu.memory_space<vmem>>, vector<16x8xf32>,
    return
  }
  func.func @transform_0(%arg0: i32) -> (i32, i32) {
    %c0_i32 = arith.constant 0 : i32
    %c0_i32_0 = arith.constant 0 : i32
    return %arg0, %c0_i32 : i32, i32
  }
  func.func @transform_1(%arg0: i32) -> (i32, i32) {
    %c0_i32 = arith.constant 0 : i32
    %c0_i32_0 = arith.constant 0 : i32
    %c0_i32_1 = arith.constant 0 : i32
    return %c0_i32, %c0_i32_0 : i32, i32
  }
  func.func @transform_2(%arg0: i32) -> (i32, i32) {
    %c0_i32 = arith.constant 0 : i32
    %c0_i32_0 = arith.constant 0 : i32
    %c0_i32_1 = arith.constant 0 : i32
    return %c0_i32, %c0_i32_0 : i32, i32
  }
  func.func @transform_3(%arg0: i32) -> (i32, i32) {
    %c0_i32 = arith.constant 0 : i32
    %c0_i32_0 = arith.constant 0 : i32
    %c0_i32_1 = arith.constant 0 : i32
    return %c0_i32, %c0_i32_0 : i32, i32
  }
  func.func @transform_4(%arg0: i32) -> (i32, i32) {
    %c0_i32 = arith.constant 0 : i32
    %c0_i32_0 = arith.constant 0 : i32
    %c0_i32_1 = arith.constant 0 : i32
    return %c0_i32, %c0_i32_0 : i32, i32
  }
  func.func @transform_5(%arg0: i32) -> (i32, i32) {
    %c0_i32 = arith.constant 0 : i32
    %c0_i32_0 = arith.constant 0 : i32
    return %arg0, %c0_i32 : i32, i32
  }
}

</mosaic_0001>

<llo_original>
// kernel: tpu_custom_call.1
$region0: #{tpu_custom_call.1}
  #allocation0 [shape = 'u32[]', space=smem, size = 0x4, offset = 0x4, fixed_abs, tag = 'smem constant byte address 0x4 - core index']
  #allocation1 [shape = 'u32[144,128]{1,0:T(1,128)}', space=vmem, size = 0x12000, scoped, tag = 'internal scratch']
  %s0 = inlined_call_operand.hbm [shape: bf16[16,1152], index: 0, kind: input, shape index: {}]
  %s1 = inlined_call_operand.hbm [shape: bf16[1152,128], index: 1, kind: input, shape index: {}]
  %s2 = inlined_call_operand.vmem [shape: f32[1,128], index: 2, kind: input, shape index: {}]
  %s3 = inlined_call_operand.hbm [shape: bf16[128,128], index: 3, kind: input, shape index: {}]
  %s4 = inlined_call_operand.vmem [shape: f32[1,128], index: 4, kind: input, shape index: {}]
  %s5 = inlined_call_operand.vmem [shape: f32[16,8], index: 5, kind: output, shape index: {}]
  %s6 = sld [smem:[#allocation0]]
  $region42: #{tpu_custom_call.1} parent=0
    _
  %s8 = ssub.s32 1, %s6
  %s9 = scalar_select 0, %s8, %s6
  $region1: #{tpu_custom_call.1} parent=0
    #allocation2 [shape = 'u8[36864]{0}', space=vmem, size = 0x9000, scoped, tag = 'input window, operand 0, single buffered']
    #allocation3 [shape = 's32[1]{0}', space=sflag, size = 0x4, scoped, tag = 'scoped memory for tpu_custom_call.1']
    #allocation4 [shape = 'u8[294912]{0}', space=vmem, size = 0x48000, scoped, tag = 'input window, operand 1, single buffered']
    #allocation5 [shape = 's32[1]{0}', space=sflag, size = 0x4, scoped, tag = 'scoped memory for tpu_custom_call.1']
    #allocation6 [shape = 'u8[32768]{0}', space=vmem, size = 0x8000, scoped, tag = 'input window, operand 3, single buffered']
    %10 = vsyncpa [#allocation3], 0
    %11 = vsyncpa [#allocation5], 0
    // Predicated region
    $region2: #{tpu_custom_call.1} parent=1 // pred_check
      _
    $region3: #{tpu_custom_call.1} parent=1 // pred_check_branch
      %13 = sbr.rel (0) target = $region5
    $region4: #{tpu_custom_call.1} parent=1 // pred_region
      %s15 = ssub.s32 1152, 1152
      %16 = vsyncadd [#allocation3], %s15
      %s17 = sshll.u32 [#allocation2], 4
      %s18 = int_to_ptr.vmem [resolvable:$true] %s17
      %23 = dma.hbm_to_vmem [thread:$0]  %s0, 1152, %s18, [#allocation3], 576, 576, 36
    $region5: #{tpu_custom_call.1} parent=1 // pred_fallthru
      _
    // Predicated region
    $region6: #{tpu_custom_call.1} parent=1 // pred_check
      _
    $region7: #{tpu_custom_call.1} parent=1 // pred_check_branch
      %25 = sbr.rel (0) target = $region9
    $region8: #{tpu_custom_call.1} parent=1 // pred_region
      %s27 = ssub.s32 9216, 9216
      %28 = vsyncadd [#allocation5], %s27
      %s29 = sshll.u32 [#allocation4], 4
      %s30 = int_to_ptr.vmem [resolvable:$true] %s29
      %35 = dma.hbm_to_vmem [thread:$0]  %s1, 9216, %s30, [#allocation5], 64, 64, 4
    $region9: #{tpu_custom_call.1} parent=1 // pred_fallthru
      _
    // Predicated region
    $region10: #{tpu_custom_call.1} parent=1 // pred_check
      _
    $region11: #{tpu_custom_call.1} parent=1 // pred_check_branch
      %37 = sbr.rel (0) target = $region13
    $region12: #{tpu_custom_call.1} parent=1 // pred_region
      _
    $region13: #{tpu_custom_call.1} parent=1 // pred_fallthru
      _
    // Predicated region
    $region14: #{tpu_custom_call.1} parent=1 // pred_check
      _
    $region15: #{tpu_custom_call.1} parent=1 // pred_check_branch
      %39 = sbr.rel (0) target = $region17
    $region16: #{tpu_custom_call.1} parent=1 // pred_region
      %s41 = ssub.s32 1024, 1024
      %42 = vsyncadd [#allocation5], %s41
      %s43 = sshll.u32 [#allocation6], 4
      %s44 = int_to_ptr.vmem [resolvable:$true] %s43
      %49 = dma.hbm_to_vmem [thread:$0]  %s3, 1024, %s44, [#allocation5], 64, 64, 4
    $region17: #{tpu_custom_call.1} parent=1 // pred_fallthru
      _
    // Predicated region
    $region18: #{tpu_custom_call.1} parent=1 // pred_check
      _
    $region19: #{tpu_custom_call.1} parent=1 // pred_check_branch
      %51 = sbr.rel (0) target = $region21
    $region20: #{tpu_custom_call.1} parent=1 // pred_region
      _
    $region21: #{tpu_custom_call.1} parent=1 // pred_fallthru
      _
    // Predicated region
    $region22: #{tpu_custom_call.1} parent=1 // pred_check
      _
    $region23: #{tpu_custom_call.1} parent=1 // pred_check_branch
      %53 = sbr.rel (0) target = $region25
    $region24: #{tpu_custom_call.1} parent=1 // pred_region
      %54 = dma.done [#allocation3], 1152
    $region25: #{tpu_custom_call.1} parent=1 // pred_fallthru
      _
    // Predicated region
    $region26: #{tpu_custom_call.1} parent=1 // pred_check
      _
    $region27: #{tpu_custom_call.1} parent=1 // pred_check_branch
      %56 = sbr.rel (0) target = $region29
    $region28: #{tpu_custom_call.1} parent=1 // pred_region
      %57 = dma.done [#allocation5], 9216
    $region29: #{tpu_custom_call.1} parent=1 // pred_fallthru
      _
    // Predicated region
    $region30: #{tpu_custom_call.1} parent=1 // pred_check
      _
    $region31: #{tpu_custom_call.1} parent=1 // pred_check_branch
      %59 = sbr.rel (0) target = $region33
    $region32: #{tpu_custom_call.1} parent=1 // pred_region
      %60 = dma.done [#allocation5], 1024
    $region33: #{tpu_custom_call.1} parent=1 // pred_fallthru
      _
    %v62 = vld [vmem:[#allocation2] sm:$0xff]
    %v63 = vld [vmem:[#allocation2 + $0x8] sm:$0xff]
    %v64 = vld [vmem:[#allocation2 + $0x10] sm:$0xff]
    %v65 = vld [vmem:[#allocation2 + $0x18] sm:$0xff]
    %v66 = vld [vmem:[#allocation2 + $0x20] sm:$0xf]
    %v67 = vld [vmem:[#allocation2 + $0x24] sm:$0xff]
    %v68 = vld [vmem:[#allocation2 + $0x2c] sm:$0xff]
    %v69 = vld [vmem:[#allocation2 + $0x34] sm:$0xff]
    %v70 = vld [vmem:[#allocation2 + $0x3c] sm:$0xff]
    %v71 = vld [vmem:[#allocation2 + $0x44] sm:$0xf]
    %v72 = vld [vmem:[#allocation4] sm:$0xf]
    %v73 = vld [vmem:[#allocation4 + $0x4] sm:$0xf]
    %v74 = vld [vmem:[#allocation4 + $0x8] sm:$0xf]
    %v75 = vld [vmem:[#allocation4 + $0xc] sm:$0xf]
    %v76 = vld [vmem:[#allocation4 + $0x10] sm:$0xf]
    %v77 = vld [vmem:[#allocation4 + $0x14] sm:$0xf]
    %v78 = vld [vmem:[#allocation4 + $0x18] sm:$0xf]
    %v79 = vld [vmem:[#allocation4 + $0x1c] sm:$0xf]
    %v80 = vld [vmem:[#allocation4 + $0x20] sm:$0xf]
    %v81 = vld [vmem:[#allocation4 + $0x24] sm:$0xf]
    %v82 = vld [vmem:[#allocation4 + $0x28] sm:$0xf]
    %v83 = vld [vmem:[#allocation4 + $0x2c] sm:$0xf]
    %v84 = vld [vmem:[#allocation4 + $0x30] sm:$0xf]
    %v85 = vld [vmem:[#allocation4 + $0x34] sm:$0xf]
    %v86 = vld [vmem:[#allocation4 + $0x38] sm:$0xf]
    %v87 = vld [vmem:[#allocation4 + $0x3c] sm:$0xf]
    %v88 = vld [vmem:[#allocation4 + $0x40] sm:$0xf]
    %v89 = vld [vmem:[#allocation4 + $0x44] sm:$0xf]
    %v90 = vld [vmem:[#allocation4 + $0x48] sm:$0xf]
    %v91 = vld [vmem:[#allocation4 + $0x4c] sm:$0xf]
    %v92 = vld [vmem:[#allocation4 + $0x50] sm:$0xf]
    %v93 = vld [vmem:[#allocation4 + $0x54] sm:$0xf]
    %v94 = vld [vmem:[#allocation4 + $0x58] sm:$0xf]
    %v95 = vld [vmem:[#allocation4 + $0x5c] sm:$0xf]
    %v96 = vld [vmem:[#allocation4 + $0x60] sm:$0xf]
    %v97 = vld [vmem:[#allocation4 + $0x64] sm:$0xf]
    %v98 = vld [vmem:[#allocation4 + $0x68] sm:$0xf]
    %v99 = vld [vmem:[#allocation4 + $0x6c] sm:$0xf]
    %v100 = vld [vmem:[#allocation4 + $0x70] sm:$0xf]
    %v101 = vld [vmem:[#allocation4 + $0x74] sm:$0xf]
    %v102 = vld [vmem:[#allocation4 + $0x78] sm:$0xf]
    %v103 = vld [vmem:[#allocation4 + $0x7c] sm:$0xf]
    %v104 = vld [vmem:[#allocation4 + $0x80] sm:$0xf]
    %v105 = vld [vmem:[#allocation4 + $0x84] sm:$0xf]
    %v106 = vld [vmem:[#allocation4 + $0x88] sm:$0xf]
    %v107 = vld [vmem:[#allocation4 + $0x8c] sm:$0xf]
    %v108 = vld [vmem:[#allocation4 + $0x90] sm:$0xf]
    %v109 = vld [vmem:[#allocation4 + $0x94] sm:$0xf]
    %v110 = vld [vmem:[#allocation4 + $0x98] sm:$0xf]
    %v111 = vld [vmem:[#allocation4 + $0x9c] sm:$0xf]
    %v112 = vld [vmem:[#allocation4 + $0xa0] sm:$0xf]
    %v113 = vld [vmem:[#allocation4 + $0xa4] sm:$0xf]
    %v114 = vld [vmem:[#allocation4 + $0xa8] sm:$0xf]
    %v115 = vld [vmem:[#allocation4 + $0xac] sm:$0xf]
    %v116 = vld [vmem:[#allocation4 + $0xb0] sm:$0xf]
    %v117 = vld [vmem:[#allocation4 + $0xb4] sm:$0xf]
    %v118 = vld [vmem:[#allocation4 + $0xb8] sm:$0xf]
    %v119 = vld [vmem:[#allocation4 + $0xbc] sm:$0xf]
    %v120 = vld [vmem:[#allocation4 + $0xc0] sm:$0xf]
    %v121 = vld [vmem:[#allocation4 + $0xc4] sm:$0xf]
    %v122 = vld [vmem:[#allocation4 + $0xc8] sm:$0xf]
    %v123 = vld [vmem:[#allocation4 + $0xcc] sm:$0xf]
    %v124 = vld [vmem:[#allocation4 + $0xd0] sm:$0xf]
    %v125 = vld [vmem:[#allocation4 + $0xd4] sm:$0xf]
    %v126 = vld [vmem:[#allocation4 + $0xd8] sm:$0xf]
    %v127 = vld [vmem:[#allocation4 + $0xdc] sm:$0xf]
    %v128 = vld [vmem:[#allocation4 + $0xe0] sm:$0xf]
    %v129 = vld [vmem:[#allocation4 + $0xe4] sm:$0xf]
    %v130 = vld [vmem:[#allocation4 + $0xe8] sm:$0xf]
    %v131 = vld [vmem:[#allocation4 + $0xec] sm:$0xf]
    %v132 = vld [vmem:[#allocation4 + $0xf0] sm:$0xf]
    %v133 = vld [vmem:[#allocation4 + $0xf4] sm:$0xf]
    %v134 = vld [vmem:[#allocation4 + $0xf8] sm:$0xf]
    %v135 = vld [vmem:[#allocation4 + $0xfc] sm:$0xf]
    %v136 = vld [vmem:[#allocation4 + $0x100] sm:$0xf]
    %v137 = vld [vmem:[#allocation4 + $0x104] sm:$0xf]
    %v138 = vld [vmem:[#allocation4 + $0x108] sm:$0xf]
    %v139 = vld [vmem:[#allocation4 + $0x10c] sm:$0xf]
    %v140 = vld [vmem:[#allocation4 + $0x110] sm:$0xf]
    %v141 = vld [vmem:[#allocation4 + $0x114] sm:$0xf]
    %v142 = vld [vmem:[#allocation4 + $0x118] sm:$0xf]
    %v143 = vld [vmem:[#allocation4 + $0x11c] sm:$0xf]
    %v144 = vld [vmem:[#allocation4 + $0x120] sm:$0xf]
    %v145 = vld [vmem:[#allocation4 + $0x124] sm:$0xf]
    %v146 = vld [vmem:[#allocation4 + $0x128] sm:$0xf]
    %v147 = vld [vmem:[#allocation4 + $0x12c] sm:$0xf]
    %v148 = vld [vmem:[#allocation4 + $0x130] sm:$0xf]
    %v149 = vld [vmem:[#allocation4 + $0x134] sm:$0xf]
    %v150 = vld [vmem:[#allocation4 + $0x138] sm:$0xf]
    %v151 = vld [vmem:[#allocation4 + $0x13c] sm:$0xf]
    %v152 = vld [vmem:[#allocation4 + $0x140] sm:$0xf]
    %v153 = vld [vmem:[#allocation4 + $0x144] sm:$0xf]
    %v154 = vld [vmem:[#allocation4 + $0x148] sm:$0xf]
    %v155 = vld [vmem:[#allocation4 + $0x14c] sm:$0xf]
    %v156 = vld [vmem:[#allocation4 + $0x150] sm:$0xf]
    %v157 = vld [vmem:[#allocation4 + $0x154] sm:$0xf]
    %v158 = vld [vmem:[#allocation4 + $0x158] sm:$0xf]
    %v159 = vld [vmem:[#allocation4 + $0x15c] sm:$0xf]
    %v160 = vld [vmem:[#allocation4 + $0x160] sm:$0xf]
    %v161 = vld [vmem:[#allocation4 + $0x164] sm:$0xf]
    %v162 = vld [vmem:[#allocation4 + $0x168] sm:$0xf]
    %v163 = vld [vmem:[#allocation4 + $0x16c] sm:$0xf]
    %v164 = vld [vmem:[#allocation4 + $0x170] sm:$0xf]
    %v165 = vld [vmem:[#allocation4 + $0x174] sm:$0xf]
    %v166 = vld [vmem:[#allocation4 + $0x178] sm:$0xf]
    %v167 = vld [vmem:[#allocation4 + $0x17c] sm:$0xf]
    %v168 = vld [vmem:[#allocation4 + $0x180] sm:$0xf]
    %v169 = vld [vmem:[#allocation4 + $0x184] sm:$0xf]
    %v170 = vld [vmem:[#allocation4 + $0x188] sm:$0xf]
    %v171 = vld [vmem:[#allocation4 + $0x18c] sm:$0xf]
    %v172 = vld [vmem:[#allocation4 + $0x190] sm:$0xf]
    %v173 = vld [vmem:[#allocation4 + $0x194] sm:$0xf]
    %v174 = vld [vmem:[#allocation4 + $0x198] sm:$0xf]
    %v175 = vld [vmem:[#allocation4 + $0x19c] sm:$0xf]
    %v176 = vld [vmem:[#allocation4 + $0x1a0] sm:$0xf]
    %v177 = vld [vmem:[#allocation4 + $0x1a4] sm:$0xf]
    %v178 = vld [vmem:[#allocation4 + $0x1a8] sm:$0xf]
    %v179 = vld [vmem:[#allocation4 + $0x1ac] sm:$0xf]
    %v180 = vld [vmem:[#allocation4 + $0x1b0] sm:$0xf]
    %v181 = vld [vmem:[#allocation4 + $0x1b4] sm:$0xf]
    %v182 = vld [vmem:[#allocation4 + $0x1b8] sm:$0xf]
    %v183 = vld [vmem:[#allocation4 + $0x1bc] sm:$0xf]
    %v184 = vld [vmem:[#allocation4 + $0x1c0] sm:$0xf]
    %v185 = vld [vmem:[#allocation4 + $0x1c4] sm:$0xf]
    %v186 = vld [vmem:[#allocation4 + $0x1c8] sm:$0xf]
    %v187 = vld [vmem:[#allocation4 + $0x1cc] sm:$0xf]
    %v188 = vld [vmem:[#allocation4 + $0x1d0] sm:$0xf]
    %v189 = vld [vmem:[#allocation4 + $0x1d4] sm:$0xf]
    %v190 = vld [vmem:[#allocation4 + $0x1d8] sm:$0xf]
    %v191 = vld [vmem:[#allocation4 + $0x1dc] sm:$0xf]
    %v192 = vld [vmem:[#allocation4 + $0x1e0] sm:$0xf]
    %v193 = vld [vmem:[#allocation4 + $0x1e4] sm:$0xf]
    %v194 = vld [vmem:[#allocation4 + $0x1e8] sm:$0xf]
    %v195 = vld [vmem:[#allocation4 + $0x1ec] sm:$0xf]
    %v196 = vld [vmem:[#allocation4 + $0x1f0] sm:$0xf]
    %v197 = vld [vmem:[#allocation4 + $0x1f4] sm:$0xf]
    %v198 = vld [vmem:[#allocation4 + $0x1f8] sm:$0xf]
    %v199 = vld [vmem:[#allocation4 + $0x1fc] sm:$0xf]
    %v200 = vld [vmem:[#allocation4 + $0x200] sm:$0xf]
    %v201 = vld [vmem:[#allocation4 + $0x204] sm:$0xf]
    %v202 = vld [vmem:[#allocation4 + $0x208] sm:$0xf]
    %v203 = vld [vmem:[#allocation4 + $0x20c] sm:$0xf]
    %v204 = vld [vmem:[#allocation4 + $0x210] sm:$0xf]
    %v205 = vld [vmem:[#allocation4 + $0x214] sm:$0xf]
    %v206 = vld [vmem:[#allocation4 + $0x218] sm:$0xf]
    %v207 = vld [vmem:[#allocation4 + $0x21c] sm:$0xf]
    %v208 = vld [vmem:[#allocation4 + $0x220] sm:$0xf]
    %v209 = vld [vmem:[#allocation4 + $0x224] sm:$0xf]
    %v210 = vld [vmem:[#allocation4 + $0x228] sm:$0xf]
    %v211 = vld [vmem:[#allocation4 + $0x22c] sm:$0xf]
    %v212 = vld [vmem:[#allocation4 + $0x230] sm:$0xf]
    %v213 = vld [vmem:[#allocation4 + $0x234] sm:$0xf]
    %v214 = vld [vmem:[#allocation4 + $0x238] sm:$0xf]
    %v215 = vld [vmem:[#allocation4 + $0x23c] sm:$0xf]
    %v216 = vld [vmem:[%s2] sm:$0x1]
    %v218 = vlaneseq
    %v219 = vshrl.u32 %v218, 7
    %v220 = vsub.s32 0, %v219
    %v221 = vrot.slane %v216, %v220
    %v233 = vunpack.c.l.b16 %v62
    %v234 = vunpack.c.h.b16 %v62
    %v235 = vunpack.c.l.b16 %v63
    %v236 = vunpack.c.h.b16 %v63
    %v237 = vunpack.c.l.b16 %v64
    %v238 = vunpack.c.h.b16 %v64
    %v239 = vunpack.c.l.b16 %v65
    %v240 = vunpack.c.h.b16 %v65
    %v241 = vunpack.c.l.b16 %v66
    %v242 = vunpack.c.l.b16 %v67
    %v243 = vunpack.c.h.b16 %v67
    %v244 = vunpack.c.l.b16 %v68
    %v245 = vunpack.c.h.b16 %v68
    %v246 = vunpack.c.l.b16 %v69
    %v247 = vunpack.c.h.b16 %v69
    %v248 = vunpack.c.l.b16 %v70
    %v249 = vunpack.c.h.b16 %v70
    %v250 = vunpack.c.l.b16 %v71
    %v251 = vpack.c.b16 %v242, %v233
    %v252 = vpack.c.b16 %v243, %v234
    %v253 = vpack.c.b16 %v244, %v235
    %v254 = vpack.c.b16 %v245, %v236
    %v255 = vpack.c.b16 %v246, %v237
    %v256 = vpack.c.b16 %v247, %v238
    %v257 = vpack.c.b16 %v248, %v239
    %v258 = vpack.c.b16 %v249, %v240
    %v259 = vpack.c.b16 %v250, %v241
    %v413 = vunpack.c.l.b16 %v72
    %v414 = vunpack.c.l.b16 %v73
    %v415 = vunpack.c.l.b16 %v74
    %v416 = vunpack.c.l.b16 %v75
    %v417 = vunpack.c.l.b16 %v76
    %v418 = vunpack.c.l.b16 %v77
    %v419 = vunpack.c.l.b16 %v78
    %v420 = vunpack.c.l.b16 %v79
    %v421 = vunpack.c.l.b16 %v80
    %v422 = vunpack.c.l.b16 %v81
    %v423 = vunpack.c.l.b16 %v82
    %v424 = vunpack.c.l.b16 %v83
    %v425 = vunpack.c.l.b16 %v84
    %v426 = vunpack.c.l.b16 %v85
    %v427 = vunpack.c.l.b16 %v86
    %v428 = vunpack.c.l.b16 %v87
    %v429 = vunpack.c.l.b16 %v88
    %v430 = vunpack.c.l.b16 %v89
    %v431 = vunpack.c.l.b16 %v90
    %v432 = vunpack.c.l.b16 %v91
    %v433 = vunpack.c.l.b16 %v92
    %v434 = vunpack.c.l.b16 %v93
    %v435 = vunpack.c.l.b16 %v94
    %v436 = vunpack.c.l.b16 %v95
    %v437 = vunpack.c.l.b16 %v96
    %v438 = vunpack.c.l.b16 %v97
    %v439 = vunpack.c.l.b16 %v98
    %v440 = vunpack.c.l.b16 %v99
    %v441 = vunpack.c.l.b16 %v100
    %v442 = vunpack.c.l.b16 %v101
    %v443 = vunpack.c.l.b16 %v102
    %v444 = vunpack.c.l.b16 %v103
    %v445 = vunpack.c.l.b16 %v104
    %v446 = vunpack.c.l.b16 %v105
    %v447 = vunpack.c.l.b16 %v106
    %v448 = vunpack.c.l.b16 %v107
    %v449 = vunpack.c.l.b16 %v108
    %v450 = vunpack.c.l.b16 %v109
    %v451 = vunpack.c.l.b16 %v110
    %v452 = vunpack.c.l.b16 %v111
    %v453 = vunpack.c.l.b16 %v112
    %v454 = vunpack.c.l.b16 %v113
    %v455 = vunpack.c.l.b16 %v114
    %v456 = vunpack.c.l.b16 %v115
    %v457 = vunpack.c.l.b16 %v116
    %v458 = vunpack.c.l.b16 %v117
    %v459 = vunpack.c.l.b16 %v118
    %v460 = vunpack.c.l.b16 %v119
    %v461 = vunpack.c.l.b16 %v120
    %v462 = vunpack.c.l.b16 %v121
    %v463 = vunpack.c.l.b16 %v122
    %v464 = vunpack.c.l.b16 %v123
    %v465 = vunpack.c.l.b16 %v124
    %v466 = vunpack.c.l.b16 %v125
    %v467 = vunpack.c.l.b16 %v126
    %v468 = vunpack.c.l.b16 %v127
    %v469 = vunpack.c.l.b16 %v128
    %v470 = vunpack.c.l.b16 %v129
    %v471 = vunpack.c.l.b16 %v130
    %v472 = vunpack.c.l.b16 %v131
    %v473 = vunpack.c.l.b16 %v132
    %v474 = vunpack.c.l.b16 %v133
    %v475 = vunpack.c.l.b16 %v134
    %v476 = vunpack.c.l.b16 %v135
    %v477 = vunpack.c.l.b16 %v136
    %v478 = vunpack.c.l.b16 %v137
    %v479 = vunpack.c.l.b16 %v138
    %v480 = vunpack.c.l.b16 %v139
    %v481 = vunpack.c.l.b16 %v140
    %v482 = vunpack.c.l.b16 %v141
    %v483 = vunpack.c.l.b16 %v142
    %v484 = vunpack.c.l.b16 %v143
    %v485 = vunpack.c.l.b16 %v144
    %v486 = vunpack.c.l.b16 %v145
    %v487 = vunpack.c.l.b16 %v146
    %v488 = vunpack.c.l.b16 %v147
    %v489 = vunpack.c.l.b16 %v148
    %v490 = vunpack.c.l.b16 %v149
    %v491 = vunpack.c.l.b16 %v150
    %v492 = vunpack.c.l.b16 %v151
    %v493 = vunpack.c.l.b16 %v152
    %v494 = vunpack.c.l.b16 %v153
    %v495 = vunpack.c.l.b16 %v154
    %v496 = vunpack.c.l.b16 %v155
    %v497 = vunpack.c.l.b16 %v156
    %v498 = vunpack.c.l.b16 %v157
    %v499 = vunpack.c.l.b16 %v158
    %v500 = vunpack.c.l.b16 %v159
    %v501 = vunpack.c.l.b16 %v160
    %v502 = vunpack.c.l.b16 %v161
    %v503 = vunpack.c.l.b16 %v162
    %v504 = vunpack.c.l.b16 %v163
    %v505 = vunpack.c.l.b16 %v164
    %v506 = vunpack.c.l.b16 %v165
    %v507 = vunpack.c.l.b16 %v166
    %v508 = vunpack.c.l.b16 %v167
    %v509 = vunpack.c.l.b16 %v168
    %v510 = vunpack.c.l.b16 %v169
    %v511 = vunpack.c.l.b16 %v170
    %v512 = vunpack.c.l.b16 %v171
    %v513 = vunpack.c.l.b16 %v172
    %v514 = vunpack.c.l.b16 %v173
    %v515 = vunpack.c.l.b16 %v174
    %v516 = vunpack.c.l.b16 %v175
    %v517 = vunpack.c.l.b16 %v176
    %v518 = vunpack.c.l.b16 %v177
    %v519 = vunpack.c.l.b16 %v178
    %v520 = vunpack.c.l.b16 %v179
    %v521 = vunpack.c.l.b16 %v180
    %v522 = vunpack.c.l.b16 %v181
    %v523 = vunpack.c.l.b16 %v182
    %v524 = vunpack.c.l.b16 %v183
    %v525 = vunpack.c.l.b16 %v184
    %v526 = vunpack.c.l.b16 %v185
    %v527 = vunpack.c.l.b16 %v186
    %v528 = vunpack.c.l.b16 %v187
    %v529 = vunpack.c.l.b16 %v188
    %v530 = vunpack.c.l.b16 %v189
    %v531 = vunpack.c.l.b16 %v190
    %v532 = vunpack.c.l.b16 %v191
    %v533 = vunpack.c.l.b16 %v192
    %v534 = vunpack.c.l.b16 %v193
    %v535 = vunpack.c.l.b16 %v194
    %v536 = vunpack.c.l.b16 %v195
    %v537 = vunpack.c.l.b16 %v196
    %v538 = vunpack.c.l.b16 %v197
    %v539 = vunpack.c.l.b16 %v198
    %v540 = vunpack.c.l.b16 %v199
    %v541 = vunpack.c.l.b16 %v200
    %v542 = vunpack.c.l.b16 %v201
    %v543 = vunpack.c.l.b16 %v202
    %v544 = vunpack.c.l.b16 %v203
    %v545 = vunpack.c.l.b16 %v204
    %v546 = vunpack.c.l.b16 %v205
    %v547 = vunpack.c.l.b16 %v206
    %v548 = vunpack.c.l.b16 %v207
    %v549 = vunpack.c.l.b16 %v208
    %v550 = vunpack.c.l.b16 %v209
    %v551 = vunpack.c.l.b16 %v210
    %v552 = vunpack.c.l.b16 %v211
    %v553 = vunpack.c.l.b16 %v212
    %v554 = vunpack.c.l.b16 %v213
    %v555 = vunpack.c.l.b16 %v214
    %v556 = vunpack.c.l.b16 %v215
    %v557 = vpack.c.b16 %v414, %v413
    %v558 = vpack.c.b16 %v416, %v415
    %v559 = vpack.c.b16 %v418, %v417
    %v560 = vpack.c.b16 %v420, %v419
    %v561 = vpack.c.b16 %v422, %v421
    %v562 = vpack.c.b16 %v424, %v423
    %v563 = vpack.c.b16 %v426, %v425
    %v564 = vpack.c.b16 %v428, %v427
    %v565 = vpack.c.b16 %v430, %v429
    %v566 = vpack.c.b16 %v432, %v431
    %v567 = vpack.c.b16 %v434, %v433
    %v568 = vpack.c.b16 %v436, %v435
    %v569 = vpack.c.b16 %v438, %v437
    %v570 = vpack.c.b16 %v440, %v439
    %v571 = vpack.c.b16 %v442, %v441
    %v572 = vpack.c.b16 %v444, %v443
    %v573 = vpack.c.b16 %v446, %v445
    %v574 = vpack.c.b16 %v448, %v447
    %v575 = vpack.c.b16 %v450, %v449
    %v576 = vpack.c.b16 %v452, %v451
    %v577 = vpack.c.b16 %v454, %v453
    %v578 = vpack.c.b16 %v456, %v455
    %v579 = vpack.c.b16 %v458, %v457
    %v580 = vpack.c.b16 %v460, %v459
    %v581 = vpack.c.b16 %v462, %v461
    %v582 = vpack.c.b16 %v464, %v463
    %v583 = vpack.c.b16 %v466, %v465
    %v584 = vpack.c.b16 %v468, %v467
    %v585 = vpack.c.b16 %v470, %v469
    %v586 = vpack.c.b16 %v472, %v471
    %v587 = vpack.c.b16 %v474, %v473
    %v588 = vpack.c.b16 %v476, %v475
    %v589 = vpack.c.b16 %v478, %v477
    %v590 = vpack.c.b16 %v480, %v479
    %v591 = vpack.c.b16 %v482, %v481
    %v592 = vpack.c.b16 %v484, %v483
    %v593 = vpack.c.b16 %v486, %v485
    %v594 = vpack.c.b16 %v488, %v487
    %v595 = vpack.c.b16 %v490, %v489
    %v596 = vpack.c.b16 %v492, %v491
    %v597 = vpack.c.b16 %v494, %v493
    %v598 = vpack.c.b16 %v496, %v495
    %v599 = vpack.c.b16 %v498, %v497
    %v600 = vpack.c.b16 %v500, %v499
    %v601 = vpack.c.b16 %v502, %v501
    %v602 = vpack.c.b16 %v504, %v503
    %v603 = vpack.c.b16 %v506, %v505
    %v604 = vpack.c.b16 %v508, %v507
    %v605 = vpack.c.b16 %v510, %v509
    %v606 = vpack.c.b16 %v512, %v511
    %v607 = vpack.c.b16 %v514, %v513
    %v608 = vpack.c.b16 %v516, %v515
    %v609 = vpack.c.b16 %v518, %v517
    %v610 = vpack.c.b16 %v520, %v519
    %v611 = vpack.c.b16 %v522, %v521
    %v612 = vpack.c.b16 %v524, %v523
    %v613 = vpack.c.b16 %v526, %v525
    %v614 = vpack.c.b16 %v528, %v527
    %v615 = vpack.c.b16 %v530, %v529
    %v616 = vpack.c.b16 %v532, %v531
    %v617 = vpack.c.b16 %v534, %v533
    %v618 = vpack.c.b16 %v536, %v535
    %v619 = vpack.c.b16 %v538, %v537
    %v620 = vpack.c.b16 %v540, %v539
    %v621 = vpack.c.b16 %v542, %v541
    %v622 = vpack.c.b16 %v544, %v543
    %v623 = vpack.c.b16 %v546, %v545
    %v624 = vpack.c.b16 %v548, %v547
    %v625 = vpack.c.b16 %v550, %v549
    %v626 = vpack.c.b16 %v552, %v551
    %v627 = vpack.c.b16 %v554, %v553
    %v628 = vpack.c.b16 %v556, %v555
    %701 = vmatprep.subr.bf16.mxu0 0
    %702 = vmatpush1.bf16.msra.mxu0 %v564
    %703 = vmatprep.subr.bf16.mxu0 0
    %704 = vmatpush1.bf16.msra.mxu0 %v563
    %705 = vmatprep.subr.bf16.mxu0 0
    %706 = vmatpush1.bf16.msra.mxu0 %v562
    %707 = vmatprep.subr.bf16.mxu0 0
    %708 = vmatpush1.bf16.msra.mxu0 %v561
    %709 = vmatprep.subr.bf16.mxu0 0
    %710 = vmatpush1.bf16.msra.mxu0 %v560
    %711 = vmatprep.subr.bf16.mxu0 0
    %712 = vmatpush1.bf16.msra.mxu0 %v559
    %713 = vmatprep.subr.bf16.mxu0 0
    %714 = vmatpush1.bf16.msra.mxu0 %v558
    %715 = vmatprep.subr.bf16.mxu0 0
    %716 = vmatpush1.bf16.msra.mxu0 %v557
    %717 = vmatprep.subr.bf16.mxu0 0
    %718 = vmatpush2.bf16.msra.mxu0 %v572
    %719 = vmatprep.subr.bf16.mxu0 0
    %720 = vmatpush2.bf16.msra.mxu0 %v571
    %721 = vmatprep.subr.bf16.mxu0 0
    %722 = vmatpush2.bf16.msra.mxu0 %v570
    %723 = vmatprep.subr.bf16.mxu0 0
    %724 = vmatpush2.bf16.msra.mxu0 %v569
    %725 = vmatprep.subr.bf16.mxu0 0
    %726 = vmatpush2.bf16.msra.mxu0 %v568
    %727 = vmatprep.subr.bf16.mxu0 0
    %728 = vmatpush2.bf16.msra.mxu0 %v567
    %729 = vmatprep.subr.bf16.mxu0 0
    %730 = vmatpush2.bf16.msra.mxu0 %v566
    %731 = vmatprep.subr.bf16.mxu0 0
    %732 = vmatpush2.bf16.msra.mxu0 %v565
    %733 = vmatprep.mubr.bf16.mxu0 %v252
    %734 = vmatmul.mubr.bf16.gmra.mxu0 %v251
    %v735 = vpop.f32.mrf.mxu0
    %v736 = vadd.f32 %v221, %v735
    %v737 = vpop.f32.mrf.mxu0
    %v738 = vpop.f32.mrf.mxu0
    %v739 = vadd.f32 %v221, %v738
    %v740 = vpop.f32.mrf.mxu0
    %741 = vdwg.mxu0
    %742 = vmatprep.subr.bf16.mxu0 0
    %743 = vmatpush1.bf16.msra.mxu0 %v580
    %744 = vmatprep.subr.bf16.mxu0 0
    %745 = vmatpush1.bf16.msra.mxu0 %v579
    %746 = vmatprep.subr.bf16.mxu0 0
    %747 = vmatpush1.bf16.msra.mxu0 %v578
    %748 = vmatprep.subr.bf16.mxu0 0
    %749 = vmatpush1.bf16.msra.mxu0 %v577
    %750 = vmatprep.subr.bf16.mxu0 0
    %751 = vmatpush1.bf16.msra.mxu0 %v576
    %752 = vmatprep.subr.bf16.mxu0 0
    %753 = vmatpush1.bf16.msra.mxu0 %v575
    %754 = vmatprep.subr.bf16.mxu0 0
    %755 = vmatpush1.bf16.msra.mxu0 %v574
    %756 = vmatprep.subr.bf16.mxu0 0
    %757 = vmatpush1.bf16.msra.mxu0 %v573
    %758 = vmatprep.subr.bf16.mxu0 0
    %759 = vmatpush2.bf16.msra.mxu0 %v588
    %760 = vmatprep.subr.bf16.mxu0 0
    %761 = vmatpush2.bf16.msra.mxu0 %v587
    %762 = vmatprep.subr.bf16.mxu0 0
    %763 = vmatpush2.bf16.msra.mxu0 %v586
    %764 = vmatprep.subr.bf16.mxu0 0
    %765 = vmatpush2.bf16.msra.mxu0 %v585
    %766 = vmatprep.subr.bf16.mxu0 0
    %767 = vmatpush2.bf16.msra.mxu0 %v584
    %768 = vmatprep.subr.bf16.mxu0 0
    %769 = vmatpush2.bf16.msra.mxu0 %v583
    %770 = vmatprep.subr.bf16.mxu0 0
    %771 = vmatpush2.bf16.msra.mxu0 %v582
    %772 = vmatprep.subr.bf16.mxu0 0
    %773 = vmatpush2.bf16.msra.mxu0 %v581
    %774 = vmatprep.mubr.bf16.mxu0 %v254
    %775 = vmatmul.mubr.bf16.gmra.mxu0 %v253
    %v776 = vpop.f32.mrf.mxu0
    %v777 = vadd.f32 %v736, %v776
    %v778 = vpop.f32.mrf.mxu0
    %v779 = vpop.f32.mrf.mxu0
    %v780 = vadd.f32 %v739, %v779
    %v781 = vpop.f32.mrf.mxu0
    %782 = vdwg.mxu0
    %783 = vmatprep.subr.bf16.mxu0 0
    %784 = vmatpush1.bf16.msra.mxu0 %v596
    %785 = vmatprep.subr.bf16.mxu0 0
    %786 = vmatpush1.bf16.msra.mxu0 %v595
    %787 = vmatprep.subr.bf16.mxu0 0
    %788 = vmatpush1.bf16.msra.mxu0 %v594
    %789 = vmatprep.subr.bf16.mxu0 0
    %790 = vmatpush1.bf16.msra.mxu0 %v593
    %791 = vmatprep.subr.bf16.mxu0 0
    %792 = vmatpush1.bf16.msra.mxu0 %v592
    %793 = vmatprep.subr.bf16.mxu0 0
    %794 = vmatpush1.bf16.msra.mxu0 %v591
    %795 = vmatprep.subr.bf16.mxu0 0
    %796 = vmatpush1.bf16.msra.mxu0 %v590
    %797 = vmatprep.subr.bf16.mxu0 0
    %798 = vmatpush1.bf16.msra.mxu0 %v589
    %799 = vmatprep.subr.bf16.mxu0 0
    %800 = vmatpush2.bf16.msra.mxu0 %v604
    %801 = vmatprep.subr.bf16.mxu0 0
    %802 = vmatpush2.bf16.msra.mxu0 %v603
    %803 = vmatprep.subr.bf16.mxu0 0
    %804 = vmatpush2.bf16.msra.mxu0 %v602
    %805 = vmatprep.subr.bf16.mxu0 0
    %806 = vmatpush2.bf16.msra.mxu0 %v601
    %807 = vmatprep.subr.bf16.mxu0 0
    %808 = vmatpush2.bf16.msra.mxu0 %v600
    %809 = vmatprep.subr.bf16.mxu0 0
    %810 = vmatpush2.bf16.msra.mxu0 %v599
    %811 = vmatprep.subr.bf16.mxu0 0
    %812 = vmatpush2.bf16.msra.mxu0 %v598
    %813 = vmatprep.subr.bf16.mxu0 0
    %814 = vmatpush2.bf16.msra.mxu0 %v597
    %815 = vmatprep.mubr.bf16.mxu0 %v256
    %816 = vmatmul.mubr.bf16.gmra.mxu0 %v255
    %v817 = vpop.f32.mrf.mxu0
    %v818 = vadd.f32 %v777, %v817
    %v819 = vpop.f32.mrf.mxu0
    %v820 = vpop.f32.mrf.mxu0
    %v821 = vadd.f32 %v780, %v820
    %v822 = vpop.f32.mrf.mxu0
    %823 = vdwg.mxu0
    %824 = vmatprep.subr.bf16.mxu0 0
    %825 = vmatpush1.bf16.msra.mxu0 %v612
    %826 = vmatprep.subr.bf16.mxu0 0
    %827 = vmatpush1.bf16.msra.mxu0 %v611
    %828 = vmatprep.subr.bf16.mxu0 0
    %829 = vmatpush1.bf16.msra.mxu0 %v610
    %830 = vmatprep.subr.bf16.mxu0 0
    %831 = vmatpush1.bf16.msra.mxu0 %v609
    %832 = vmatprep.subr.bf16.mxu0 0
    %833 = vmatpush1.bf16.msra.mxu0 %v608
    %834 = vmatprep.subr.bf16.mxu0 0
    %835 = vmatpush1.bf16.msra.mxu0 %v607
    %836 = vmatprep.subr.bf16.mxu0 0
    %837 = vmatpush1.bf16.msra.mxu0 %v606
    %838 = vmatprep.subr.bf16.mxu0 0
    %839 = vmatpush1.bf16.msra.mxu0 %v605
    %840 = vmatprep.subr.bf16.mxu0 0
    %841 = vmatpush2.bf16.msra.mxu0 %v620
    %842 = vmatprep.subr.bf16.mxu0 0
    %843 = vmatpush2.bf16.msra.mxu0 %v619
    %844 = vmatprep.subr.bf16.mxu0 0
    %845 = vmatpush2.bf16.msra.mxu0 %v618
    %846 = vmatprep.subr.bf16.mxu0 0
    %847 = vmatpush2.bf16.msra.mxu0 %v617
    %848 = vmatprep.subr.bf16.mxu0 0
    %849 = vmatpush2.bf16.msra.mxu0 %v616
    %850 = vmatprep.subr.bf16.mxu0 0
    %851 = vmatpush2.bf16.msra.mxu0 %v615
    %852 = vmatprep.subr.bf16.mxu0 0
    %853 = vmatpush2.bf16.msra.mxu0 %v614
    %854 = vmatprep.subr.bf16.mxu0 0
    %855 = vmatpush2.bf16.msra.mxu0 %v613
    %856 = vmatprep.mubr.bf16.mxu0 %v258
    %857 = vmatmul.mubr.bf16.gmra.mxu0 %v257
    %v858 = vpop.f32.mrf.mxu0
    %v859 = vadd.f32 %v818, %v858
    %v860 = vpop.f32.mrf.mxu0
    %v861 = vpop.f32.mrf.mxu0
    %v862 = vadd.f32 %v821, %v861
    %v863 = vpop.f32.mrf.mxu0
    %864 = vdwg.mxu0
    %865 = vmatprep.subr.bf16.mxu0 0
    %866 = vmatpush1.bf16.msra.mxu0 %v628
    %867 = vmatprep.subr.bf16.mxu0 0
    %868 = vmatpush1.bf16.msra.mxu0 %v627
    %869 = vmatprep.subr.bf16.mxu0 0
    %870 = vmatpush1.bf16.msra.mxu0 %v626
    %871 = vmatprep.subr.bf16.mxu0 0
    %872 = vmatpush1.bf16.msra.mxu0 %v625
    %873 = vmatprep.subr.bf16.mxu0 0
    %874 = vmatpush1.bf16.msra.mxu0 %v624
    %875 = vmatprep.subr.bf16.mxu0 0
    %876 = vmatpush1.bf16.msra.mxu0 %v623
    %877 = vmatprep.subr.bf16.mxu0 0
    %878 = vmatpush1.bf16.msra.mxu0 %v622
    %879 = vmatprep.subr.bf16.mxu0 0
    %880 = vmatpush1.bf16.msra.mxu0 %v621
    %881 = vmatprep.subr.bf16.mxu0 0
    %882 = vmatpush2.bf16.msra.mxu0 0
    %883 = vmatprep.subr.bf16.mxu0 0
    %884 = vmatpush2.bf16.msra.mxu0 0
    %885 = vmatprep.subr.bf16.mxu0 0
    %886 = vmatpush2.bf16.msra.mxu0 0
    %887 = vmatprep.subr.bf16.mxu0 0
    %888 = vmatpush2.bf16.msra.mxu0 0
    %889 = vmatprep.subr.bf16.mxu0 0
    %890 = vmatpush2.bf16.msra.mxu0 0
    %891 = vmatprep.subr.bf16.mxu0 0
    %892 = vmatpush2.bf16.msra.mxu0 0
    %893 = vmatprep.subr.bf16.mxu0 0
    %894 = vmatpush2.bf16.msra.mxu0 0
    %895 = vmatprep.subr.bf16.mxu0 0
    %896 = vmatpush2.bf16.msra.mxu0 0
    %897 = vmatprep.mubr.bf16.mxu0 0
    %898 = vmatmul.mubr.bf16.gmra.mxu0 %v259
    %v899 = vpop.f32.mrf.mxu0
    %v900 = vadd.f32 %v859, %v899
    %v901 = vpop.f32.mrf.mxu0
    %v902 = vpop.f32.mrf.mxu0
    %v903 = vadd.f32 %v862, %v902
    %v904 = vpop.f32.mrf.mxu0
    %905 = vdwg.mxu0
    %v906 = vmax.f32 %v900, 0.0
    %v907 = vmax.f32 %v903, 0.0
    %v908 = vpack.c.bf16 %v907, %v906
    %v909 = vld [vmem:[#allocation6] sm:$0xf]
    %v910 = vld [vmem:[#allocation6 + $0x4] sm:$0xf]
    %v911 = vld [vmem:[#allocation6 + $0x8] sm:$0xf]
    %v912 = vld [vmem:[#allocation6 + $0xc] sm:$0xf]
    %v913 = vld [vmem:[#allocation6 + $0x10] sm:$0xf]
    %v914 = vld [vmem:[#allocation6 + $0x14] sm:$0xf]
    %v915 = vld [vmem:[#allocation6 + $0x18] sm:$0xf]
    %v916 = vld [vmem:[#allocation6 + $0x1c] sm:$0xf]
    %v917 = vld [vmem:[#allocation6 + $0x20] sm:$0xf]
    %v918 = vld [vmem:[#allocation6 + $0x24] sm:$0xf]
    %v919 = vld [vmem:[#allocation6 + $0x28] sm:$0xf]
    %v920 = vld [vmem:[#allocation6 + $0x2c] sm:$0xf]
    %v921 = vld [vmem:[#allocation6 + $0x30] sm:$0xf]
    %v922 = vld [vmem:[#allocation6 + $0x34] sm:$0xf]
    %v923 = vld [vmem:[#allocation6 + $0x38] sm:$0xf]
    %v924 = vld [vmem:[#allocation6 + $0x3c] sm:$0xf]
    %v925 = vld [vmem:[%s4] sm:$0x1]
    %v927 = vlaneseq
    %v928 = vshrl.u32 %v927, 7
    %v929 = vsub.s32 0, %v928
    %v930 = vrot.slane %v925, %v929
    %v948 = vunpack.c.l.b16 %v909
    %v949 = vunpack.c.l.b16 %v910
    %v950 = vunpack.c.l.b16 %v911
    %v951 = vunpack.c.l.b16 %v912
    %v952 = vunpack.c.l.b16 %v913
    %v953 = vunpack.c.l.b16 %v914
    %v954 = vunpack.c.l.b16 %v915
    %v955 = vunpack.c.l.b16 %v916
    %v956 = vunpack.c.l.b16 %v917
    %v957 = vunpack.c.l.b16 %v918
    %v958 = vunpack.c.l.b16 %v919
    %v959 = vunpack.c.l.b16 %v920
    %v960 = vunpack.c.l.b16 %v921
    %v961 = vunpack.c.l.b16 %v922
    %v962 = vunpack.c.l.b16 %v923
    %v963 = vunpack.c.l.b16 %v924
    %v964 = vpack.c.b16 %v949, %v948
    %v965 = vpack.c.b16 %v951, %v950
    %v966 = vpack.c.b16 %v953, %v952
    %v967 = vpack.c.b16 %v955, %v954
    %v968 = vpack.c.b16 %v957, %v956
    %v969 = vpack.c.b16 %v959, %v958
    %v970 = vpack.c.b16 %v961, %v960
    %v971 = vpack.c.b16 %v963, %v962
    %980 = vmatprep.subr.bf16.mxu0 0
    %981 = vmatpush1.bf16.msra.mxu0 %v971
    %982 = vmatprep.subr.bf16.mxu0 0
    %983 = vmatpush1.bf16.msra.mxu0 %v970
    %984 = vmatprep.subr.bf16.mxu0 0
    %985 = vmatpush1.bf16.msra.mxu0 %v969
    %986 = vmatprep.subr.bf16.mxu0 0
    %987 = vmatpush1.bf16.msra.mxu0 %v968
    %988 = vmatprep.subr.bf16.mxu0 0
    %989 = vmatpush1.bf16.msra.mxu0 %v967
    %990 = vmatprep.subr.bf16.mxu0 0
    %991 = vmatpush1.bf16.msra.mxu0 %v966
    %992 = vmatprep.subr.bf16.mxu0 0
    %993 = vmatpush1.bf16.msra.mxu0 %v965
    %994 = vmatprep.subr.bf16.mxu0 0
    %995 = vmatpush1.bf16.msra.mxu0 %v964
    %996 = vmatprep.subr.bf16.mxu0 0
    %997 = vmatpush2.bf16.msra.mxu0 0
    %998 = vmatprep.subr.bf16.mxu0 0
    %999 = vmatpush2.bf16.msra.mxu0 0
    %1000 = vmatprep.subr.bf16.mxu0 0
    %1001 = vmatpush2.bf16.msra.mxu0 0
    %1002 = vmatprep.subr.bf16.mxu0 0
    %1003 = vmatpush2.bf16.msra.mxu0 0
    %1004 = vmatprep.subr.bf16.mxu0 0
    %1005 = vmatpush2.bf16.msra.mxu0 0
    %1006 = vmatprep.subr.bf16.mxu0 0
    %1007 = vmatpush2.bf16.msra.mxu0 0
    %1008 = vmatprep.subr.bf16.mxu0 0
    %1009 = vmatpush2.bf16.msra.mxu0 0
    %1010 = vmatprep.subr.bf16.mxu0 0
    %1011 = vmatpush2.bf16.msra.mxu0 0
    %1012 = vmatprep.mubr.bf16.mxu0 0
    %1013 = vmatmul.mubr.bf16.gmra.mxu0 %v908
    %v1014 = vpop.f32.mrf.mxu0
    %v1015 = vadd.f32 %v930, %v1014
    %v1016 = vpop.f32.mrf.mxu0
    %v1017 = vpop.f32.mrf.mxu0
    %v1018 = vadd.f32 %v930, %v1017
    %v1019 = vpop.f32.mrf.mxu0
    %1020 = vdwg.mxu0
    %1021 = vmax.xlane.f32.xlu0 %v1015
    %v1022 = vpop.xlane.xlu0 %1021
    %1023 = vmax.xlane.f32.xlu0 %v1018
    %v1024 = vpop.xlane.xlu0 %1023
    %v1025 = vsub.f32 %v1015, %v1022
    %v1026 = vsub.f32 %v1018, %v1024
    %v1027 = vmul.f32 %v1025, 1.442695
    %v1028 = vpow.pop %v1027
    %v1029 = vmul.f32 %v1026, 1.442695
    %v1030 = vpow.pop %v1029
    %1031 = vadd.xlane.f32.xlu0 %v1028
    %v1032 = vpop.xlane.xlu0 %1031
    %1033 = vadd.xlane.f32.xlu0 %v1030
    %v1034 = vpop.xlane.xlu0 %1033
    %v1035 = vrcp.pop %v1032
    %v1036 = vmul.f32 %v1028, %v1035
    %v1037 = vrcp.pop %v1034
    %v1038 = vmul.f32 %v1030, %v1037
    %vm1039 = vcmask 64512
    %1040 = vst.msk [vmem:[%s5] sm:$0xff] %vm1039, %v1036
    %1041 = vst.msk [vmem:[%s5 + $0x8] sm:$0xff] %vm1039, %v1038
    // Predicated region
    $region34: #{tpu_custom_call.1} parent=1 // pred_check
      _
    $region35: #{tpu_custom_call.1} parent=1 // pred_check_branch
      %1043 = sbr.rel (0) target = $region37
    $region36: #{tpu_custom_call.1} parent=1 // pred_region
      _
    $region37: #{tpu_custom_call.1} parent=1 // pred_fallthru
      _
    // Predicated region
    $region38: #{tpu_custom_call.1} parent=1 // pred_check
      _
    $region39: #{tpu_custom_call.1} parent=1 // pred_check_branch
      %1045 = sbr.rel (0) target = $region41
    $region40: #{tpu_custom_call.1} parent=1 // pred_region
      _
    $region41: #{tpu_custom_call.1} parent=1 // pred_fallthru
      _
    %1046 = vsyncpa [#allocation3], 1
    %1047 = vsyncpa [#allocation5], 1

</llo_original>
